<compile_context>
chip_gen: v6e
topology: v6e:2x2x1
jax: 0.10.0
libtpu: 0.0.40
codegen_flags: <defaults>
</compile_context>

<pallas_src>
import numpy as np
import jax
import jax.numpy as jnp
from jax import lax
from jax.experimental import pallas as pl
from jax.experimental.pallas import tpu as pltpu


def _group_stats_kernel(x_ref, mt_ref, inv_c_ref, inv_cr_ref, sig_eye_ref,
                        mu_ref, sig_ref, musum_ref, sacc_ref):
    """Two-phase grid: phase 0 = group means, phase 1 = centered covariances.

    x_ref       : (TB, K)    feature tile
    mt_ref      : (TB, G)    one-hot group mask tile (column layout)
    inv_c_ref   : (G, 1)     1/count per group
    inv_cr_ref  : (1, G*K)   1/count replicated K times per group (lane layout)
    sig_eye_ref : (K, G*K)   sigma * I_K tiled G times along lanes
    mu_ref      : (G, K)     output: group means
    sig_ref     : (K, G*K)   output: [Sigma_0 | Sigma_1 | ...] lane-dense
    musum_ref   : (G, K)     scratch: running group sums, then mu
    sacc_ref    : (K, G*K)   scratch: running scatter sums
    """
    p = pl.program_id(0)          # phase
    b = pl.program_id(1)          # batch tile
    nb = pl.num_programs(1)
    G = mt_ref.shape[1]

    X = x_ref[...]                # (TB, K) f32
    Mt = mt_ref[...]              # (TB, G) f32 one-hot

    # ---------------- phase 0: per-group mean ----------------
    @pl.when(p == 0)
    def _mean_phase():
        @pl.when(b == 0)
        def _():
            musum_ref[...] = jnp.zeros_like(musum_ref)

        # musum += Mt^T @ X  -> (G, K)
        musum_ref[...] += lax.dot_general(
            Mt, X, (((0,), (0,)), ((), ())),
            preferred_element_type=jnp.float32)

        @pl.when(b == nb - 1)
        def _():
            mu = musum_ref[...] * inv_c_ref[...]      # (G,K) * (G,1)
            musum_ref[...] = mu                        # reused as mu in phase 1
            mu_ref[...] = mu

    # ---------------- phase 1: centered covariance ----------------
    @pl.when(p == 1)
    def _cov_phase():
        @pl.when(b == 0)
        def _():
            sacc_ref[...] = jnp.zeros_like(sacc_ref)

        mu = musum_ref[...]                                            # (G, K)
        # center every row by its own group mean (Mt is one-hot)
        Xc = X - jnp.dot(Mt, mu, preferred_element_type=jnp.float32)   # (TB, K)
        # lane-dense masked copies, groups concatenated along the lane axis
        Xw = jnp.concatenate([Xc * Mt[:, g:g + 1] for g in range(G)],
                             axis=1)                                   # (TB, G*K)
        # one fused MXU matmul instead of G tiny ones: (K, B) x (B, G*K)
        sacc_ref[...] += lax.dot_general(
            Xc, Xw, (((0,), (0,)), ((), ())),
            preferred_element_type=jnp.float32)                        # (K, G*K)

        @pl.when(b == nb - 1)
        def _():
            sig_ref[...] = sig_eye_ref[...] + sacc_ref[...] * inv_cr_ref[...]


def _group_stats(x, mt, inv_c_col, inv_c_rep, sig_eye_rep, *, G, K, TB, B_pad):
    NB = B_pad // TB
    # TODO(synk): on v7x add a leading "parallel" grid axis (over G or K tiles)
    # with per-core accumulators so both TensorCores share the covariance work.
    return pl.pallas_call(
        _group_stats_kernel,
        grid=(2, NB),
        in_specs=[
            pl.BlockSpec((TB, K), lambda p, b: (b, 0)),
            pl.BlockSpec((TB, G), lambda p, b: (b, 0)),
            pl.BlockSpec((G, 1), lambda p, b: (0, 0)),
            pl.BlockSpec((1, G * K), lambda p, b: (0, 0)),
            pl.BlockSpec((K, G * K), lambda p, b: (0, 0)),
        ],
        out_specs=(
            pl.BlockSpec((G, K), lambda p, b: (0, 0)),
            pl.BlockSpec((K, G * K), lambda p, b: (0, 0)),
        ),
        out_shape=(
            jax.ShapeDtypeStruct((G, K), jnp.float32),
            jax.ShapeDtypeStruct((K, G * K), jnp.float32),
        ),
        scratch_shapes=[
            pltpu.VMEM((G, K), jnp.float32),       # musum / mu
            pltpu.VMEM((K, G * K), jnp.float32),   # scatter accumulator
        ],
        compiler_params=pltpu.CompilerParams(
            dimension_semantics=("arbitrary", "arbitrary"),
        ),
    )(x, mt, inv_c_col, inv_c_rep, sig_eye_rep)


def privacy_loss(feature, private_attribute, sigma, tb=128):
    """Matches privacyLoss(sigma).forward(feature, private_attribute)."""
    feature = jnp.asarray(feature, jnp.float32)
    labels = np.asarray(private_attribute).reshape(-1)
    B, K = feature.shape

    # dict-insertion (first-occurrence) key order, like the PyTorch module
    keys = []
    for v in labels:
        fv = float(v)
        if fv not in keys:
            keys.append(fv)
    G = len(keys)

    Mt = np.zeros((B, G), np.float32)
    for b, v in enumerate(labels):
        Mt[b, keys.index(float(v))] = 1.0
    counts = Mt.sum(axis=0)                                   # (G,)
    inv_c = (1.0 / counts).astype(np.float32)

    # batch tile size (sublane multiple); pad B with zero rows (zero mask rows
    # contribute nothing to any of the accumulated sums).
    TB = min(int(tb), max(8, B))
    TB = max(8, (TB // 8) * 8)
    B_pad = ((B + TB - 1) // TB) * TB
    x_pad = feature if B_pad == B else jnp.pad(feature, ((0, B_pad - B), (0, 0)))
    mt_pad = Mt if B_pad == B else np.pad(Mt, ((0, B_pad - B), (0, 0)))

    inv_c_col = inv_c.reshape(G, 1)                              # (G, 1)
    inv_c_rep = np.repeat(inv_c, K).reshape(1, G * K)            # (1, G*K)
    sig_eye_rep = np.tile(float(sigma) * np.eye(K, dtype=np.float32),
                          (1, G))                                # (K, G*K)

    # TODO(synk): for production-size K (>=128) pad K to a 128 multiple and cast
    # the matmul inputs to bfloat16 (f32 accumulation) for MXU peak; kept f32 at
    # this toy K so the result matches the f64 reference within tolerance.
    mu, sig2d = _group_stats(x_pad, jnp.asarray(mt_pad),
                             jnp.asarray(inv_c_col), jnp.asarray(inv_c_rep),
                             jnp.asarray(sig_eye_rep),
                             G=G, K=K, TB=TB, B_pad=B_pad)

    Sig = sig2d.reshape(K, G, K).transpose(1, 0, 2)              # (G, K, K)

    # TODO(synk): small dense det / inverse have no clean Pallas primitive; this
    # GxG-pair glue stays in plain JAX, but factored once per group (not per pair).
    dets = jnp.linalg.det(Sig)                                   # (G,)
    invs = jnp.linalg.inv(Sig)                                   # (G, K, K)

    result = jnp.zeros((), jnp.float32)
    for i in range(G - 1):
        for j in range(1, G):
            if j != i:
                diff = (mu[i] - mu[j]).reshape(K, 1)
                quad = (diff.T @ invs[j] @ diff)[0, 0]
                tr = jnp.trace(invs[j] @ Sig[i])
                kl = 0.5 * (jnp.log2(dets[j] / (dets[i] + 1e-10) + 1e-10)
                            - K + quad + tr)
                result = result + kl * float(counts[i]) * float(counts[j])
    return (result / float(B ** 2)).reshape(1)


def _privacy_loss_ref(feature, private_attribute, sigma):
    """Pure NumPy reference, transcribed 1:1 from the PyTorch module."""
    f = np.asarray(feature, np.float64)
    labels = np.asarray(private_attribute).reshape(-1)
    B, K = f.shape
    keys, mu, cnt, Sig = [], {}, {}, {}
    for b in range(B):
        lab = float(labels[b])
        if lab in mu:
            mu[lab] = mu[lab] + f[b]
            cnt[lab] += 1
        else:
            mu[lab] = f[b].copy()
            cnt[lab] = 1
            keys.append(lab)
    for b in range(B):
        lab = float(labels[b])
        m = mu[lab] / cnt[lab]
        d = (f[b] - m).reshape(K, 1)
        Sig[lab] = Sig.get(lab, 0.0) + d @ d.T
    for lab in keys:
        mu[lab] = mu[lab] / cnt[lab]
        Sig[lab] = sigma * np.eye(K) + Sig[lab] / cnt[lab]

    def kld(s1, u1, s2, u2):
        s2i = np.linalg.inv(s2)
        diff = (u1 - u2).reshape(K, 1)
        return 0.5 * (np.log2(np.linalg.det(s2) / (np.linalg.det(s1) + 1e-10) + 1e-10)
                      - K + (diff.T @ s2i @ diff)[0, 0] + np.trace(s2i @ s1))

    res = 0.0
    for i in range(len(keys) - 1):
        for j in range(1, len(keys)):
            if j != i:
                res += kld(Sig[keys[i]], mu[keys[i]], Sig[keys[j]], mu[keys[j]]) \
                       * cnt[keys[i]] * cnt[keys[j]]
    return res / B ** 2


if __name__ == "__main__":
    key = jax.random.PRNGKey(0)
    B, K = 20, 8
    sigma = 1.0
    feature = jax.random.normal(key, (B, K), dtype=jnp.float32)
    private_attribute = jnp.array([0, 1] * (B // 2), dtype=jnp.int32)

    # tb=8 so the grid really tiles the batch (2 phases x 3 tiles, with padding)
    out = privacy_loss(feature, private_attribute, sigma, tb=8)
    out = jax.block_until_ready(out)

    ref = _privacy_loss_ref(np.asarray(feature), np.asarray(private_attribute), sigma)
    np.testing.assert_allclose(np.asarray(out)[0], ref, rtol=2e-3, atol=2e-3)

    print("KERNEL_OK")
</pallas_src>

<mosaic_0001>
module attributes {stable_mosaic.version = 11 : i64} {
  func.func @_group_stats_kernel(%arg0: i32, %arg1: i32, %arg2: memref<8x8xf32, #tpu.memory_space<vmem>>, %arg3: memref<8x2xf32, #tpu.memory_space<vmem>>, %arg4: memref<2x1xf32, #tpu.memory_space<vmem>>, %arg5: memref<1x16xf32, #tpu.memory_space<vmem>>, %arg6: memref<8x16xf32, #tpu.memory_space<vmem>>, %arg7: memref<2x8xf32, #tpu.memory_space<vmem>>, %arg8: memref<8x16xf32, #tpu.memory_space<vmem>>, %arg9: memref<2x8xf32, #tpu.memory_space<vmem>>, %arg10: memref<8x16xf32, #tpu.memory_space<vmem>>) attributes {dimension_semantics = [#tpu.dimension_semantics<arbitrary>, #tpu.dimension_semantics<arbitrary>], iteration_bounds = array<i64: 2, 3>, scalar_prefetch = 0 : i64, scratch_operands = 2 : i64, tpu.core_type = #tpu.core_type<tc>, window_params = [{transform_indices = @transform_0, window_bounds = array<i64: 8, 8>}, {transform_indices = @transform_1, window_bounds = array<i64: 8, 2>}, {pipeline_mode = #tpu.pipeline_mode<synchronous>, transform_indices = @transform_2, window_bounds = array<i64: 2, 1>}, {pipeline_mode = #tpu.pipeline_mode<synchronous>, transform_indices = @transform_3, window_bounds = array<i64: 1, 16>}, {pipeline_mode = #tpu.pipeline_mode<synchronous>, transform_indices = @transform_4, window_bounds = array<i64: 8, 16>}, {pipeline_mode = #tpu.pipeline_mode<synchronous>, transform_indices = @transform_5, window_bounds = array<i64: 2, 8>}, {pipeline_mode = #tpu.pipeline_mode<synchronous>, transform_indices = @transform_6, window_bounds = array<i64: 8, 16>}]} {
    %c0 = arith.constant 0 : index
    %c0_0 = arith.constant 0 : index
    %0 = vector.load %arg2[%c0, %c0_0] : memref<8x8xf32, #tpu.memory_space<vmem>>, vector<8x8xf32>
    %c0_1 = arith.constant 0 : index
    %c0_2 = arith.constant 0 : index
    %1 = vector.load %arg3[%c0_1, %c0_2] : memref<8x2xf32, #tpu.memory_space<vmem>>, vector<8x2xf32>
    %c0_i32 = arith.constant 0 : i32
    %2 = arith.cmpi eq, %arg0, %c0_i32 : i32
    %3 = arith.extui %2 : i1 to i32
    %c0_i32_3 = arith.constant 0 : i32
    %4 = arith.cmpi ne, %3, %c0_i32_3 : i32
    scf.if %4 {
      %c0_i32_5 = arith.constant 0 : i32
      %8 = arith.cmpi eq, %arg1, %c0_i32_5 : i32
      %9 = arith.extui %8 : i1 to i32
      %c0_i32_6 = arith.constant 0 : i32
      %10 = arith.cmpi ne, %9, %c0_i32_6 : i32
      scf.if %10 {
        %cst_12 = arith.constant 0.000000e+00 : f32
        %18 = vector.broadcast %cst_12 : f32 to vector<2x8xf32>
        %c0_13 = arith.constant 0 : index
        %c0_14 = arith.constant 0 : index
        %19 = vector.load %arg9[%c0_13, %c0_14] : memref<2x8xf32, #tpu.memory_space<vmem>>, vector<2x8xf32>
        tpu.vector_store %arg9[%c0_13, %c0_14], %18 {strides = array<i32>} : memref<2x8xf32, #tpu.memory_space<vmem>>, vector<2x8xf32>,
      } else {
      }
      %c0_7 = arith.constant 0 : index
      %c0_8 = arith.constant 0 : index
      %11 = vector.load %arg9[%c0_7, %c0_8] : memref<2x8xf32, #tpu.memory_space<vmem>>, vector<2x8xf32>
      %cst = arith.constant dense<0.000000e+00> : vector<2x8xf32>
      %12 = tpu.matmul %1, %0, %cst {dimension_numbers = #tpu.dot_dimension_numbers<[0], [0], [1], [1], [0, 1, 1, 1], [], []>} : vector<8x2xf32>, vector<8x8xf32>, vector<2x8xf32> -> vector<2x8xf32>
      %13 = arith.addf %11, %12 : vector<2x8xf32>
      %c0_9 = arith.constant 0 : index
      %c0_10 = arith.constant 0 : index
      %14 = vector.load %arg9[%c0_9, %c0_10] : memref<2x8xf32, #tpu.memory_space<vmem>>, vector<2x8xf32>
      tpu.vector_store %arg9[%c0_9, %c0_10], %13 {strides = array<i32>} : memref<2x8xf32, #tpu.memory_space<vmem>>, vector<2x8xf32>,
      %c2_i32 = arith.constant 2 : i32
      %15 = arith.cmpi eq, %arg1, %c2_i32 : i32
      %16 = arith.extui %15 : i1 to i32
      %c0_i32_11 = arith.constant 0 : i32
      %17 = arith.cmpi ne, %16, %c0_i32_11 : i32
      scf.if %17 {
        %c0_12 = arith.constant 0 : index
        %c0_13 = arith.constant 0 : index
        %18 = vector.load %arg9[%c0_12, %c0_13] : memref<2x8xf32, #tpu.memory_space<vmem>>, vector<2x8xf32>
        %c0_14 = arith.constant 0 : index
        %c0_15 = arith.constant 0 : index
        %19 = vector.load %arg4[%c0_14, %c0_15] : memref<2x1xf32, #tpu.memory_space<vmem>>, vector<2x1xf32>
        %20 = vector.broadcast %19 : vector<2x1xf32> to vector<2x8xf32>
        %21 = arith.mulf %18, %20 : vector<2x8xf32>
        %c0_16 = arith.constant 0 : index
        %c0_17 = arith.constant 0 : index
        %22 = vector.load %arg9[%c0_16, %c0_17] : memref<2x8xf32, #tpu.memory_space<vmem>>, vector<2x8xf32>
        tpu.vector_store %arg9[%c0_16, %c0_17], %21 {strides = array<i32>} : memref<2x8xf32, #tpu.memory_space<vmem>>, vector<2x8xf32>,
        %c0_18 = arith.constant 0 : index
        %c0_19 = arith.constant 0 : index
        %23 = vector.load %arg7[%c0_18, %c0_19] : memref<2x8xf32, #tpu.memory_space<vmem>>, vector<2x8xf32>
        tpu.vector_store %arg7[%c0_18, %c0_19], %21 {strides = array<i32>} : memref<2x8xf32, #tpu.memory_space<vmem>>, vector<2x8xf32>,
      } else {
      }
    } else {
    }
    %c1_i32 = arith.constant 1 : i32
    %5 = arith.cmpi eq, %arg0, %c1_i32 : i32
    %6 = arith.extui %5 : i1 to i32
    %c0_i32_4 = arith.constant 0 : i32
    %7 = arith.cmpi ne, %6, %c0_i32_4 : i32
    scf.if %7 {
      %c0_i32_5 = arith.constant 0 : i32
      %8 = arith.cmpi eq, %arg1, %c0_i32_5 : i32
      %9 = arith.extui %8 : i1 to i32
      %c0_i32_6 = arith.constant 0 : i32
      %10 = arith.cmpi ne, %9, %c0_i32_6 : i32
      scf.if %10 {
        %cst_15 = arith.constant 0.000000e+00 : f32
        %28 = vector.broadcast %cst_15 : f32 to vector<8x16xf32>
        %c0_16 = arith.constant 0 : index
        %c0_17 = arith.constant 0 : index
        %29 = vector.load %arg10[%c0_16, %c0_17] : memref<8x16xf32, #tpu.memory_space<vmem>>, vector<8x16xf32>
        tpu.vector_store %arg10[%c0_16, %c0_17], %28 {strides = array<i32>} : memref<8x16xf32, #tpu.memory_space<vmem>>, vector<8x16xf32>,
      } else {
      }
      %c0_7 = arith.constant 0 : index
      %c0_8 = arith.constant 0 : index
      %11 = vector.load %arg9[%c0_7, %c0_8] : memref<2x8xf32, #tpu.memory_space<vmem>>, vector<2x8xf32>
      %cst = arith.constant dense<0.000000e+00> : vector<8x8xf32>
      %12 = tpu.matmul %1, %11, %cst {dimension_numbers = #tpu.dot_dimension_numbers<[1], [0], [0], [1], [0, 0, 1, 1], [], []>} : vector<8x2xf32>, vector<2x8xf32>, vector<8x8xf32> -> vector<8x8xf32>
      %13 = arith.subf %0, %12 : vector<8x8xf32>
      %14 = vector.extract_strided_slice %1 {offsets = [0, 0], sizes = [8, 1], strides = [1, 1]} : vector<8x2xf32> to vector<8x1xf32>
      %15 = vector.broadcast %14 : vector<8x1xf32> to vector<8x8xf32>
      %16 = arith.mulf %13, %15 : vector<8x8xf32>
      %17 = vector.extract_strided_slice %1 {offsets = [0, 1], sizes = [8, 1], strides = [1, 1]} : vector<8x2xf32> to vector<8x1xf32>
      %18 = vector.broadcast %17 : vector<8x1xf32> to vector<8x8xf32>
      %19 = arith.mulf %13, %18 : vector<8x8xf32>
      %20 = tpu.concatenate %16, %19 in 1 : vector<8x8xf32>, vector<8x8xf32> -> vector<8x16xf32>
      %c0_9 = arith.constant 0 : index
      %c0_10 = arith.constant 0 : index
      %21 = vector.load %arg10[%c0_9, %c0_10] : memref<8x16xf32, #tpu.memory_space<vmem>>, vector<8x16xf32>
      %cst_11 = arith.constant dense<0.000000e+00> : vector<8x16xf32>
      %22 = tpu.matmul %13, %20, %cst_11 {dimension_numbers = #tpu.dot_dimension_numbers<[0], [0], [1], [1], [0, 1, 1, 1], [], []>} : vector<8x8xf32>, vector<8x16xf32>, vector<8x16xf32> -> vector<8x16xf32>
      %23 = arith.addf %21, %22 : vector<8x16xf32>
      %c0_12 = arith.constant 0 : index
      %c0_13 = arith.constant 0 : index
      %24 = vector.load %arg10[%c0_12, %c0_13] : memref<8x16xf32, #tpu.memory_space<vmem>>, vector<8x16xf32>
      tpu.vector_store %arg10[%c0_12, %c0_13], %23 {strides = array<i32>} : memref<8x16xf32, #tpu.memory_space<vmem>>, vector<8x16xf32>,
      %c2_i32 = arith.constant 2 : i32
      %25 = arith.cmpi eq, %arg1, %c2_i32 : i32
      %26 = arith.extui %25 : i1 to i32
      %c0_i32_14 = arith.constant 0 : i32
      %27 = arith.cmpi ne, %26, %c0_i32_14 : i32
      scf.if %27 {
        %c0_15 = arith.constant 0 : index
        %c0_16 = arith.constant 0 : index
        %28 = vector.load %arg6[%c0_15, %c0_16] : memref<8x16xf32, #tpu.memory_space<vmem>>, vector<8x16xf32>
        %c0_17 = arith.constant 0 : index
        %c0_18 = arith.constant 0 : index
        %29 = vector.load %arg10[%c0_17, %c0_18] : memref<8x16xf32, #tpu.memory_space<vmem>>, vector<8x16xf32>
        %c0_19 = arith.constant 0 : index
        %c0_20 = arith.constant 0 : index
        %30 = vector.load %arg5[%c0_19, %c0_20] : memref<1x16xf32, #tpu.memory_space<vmem>>, vector<1x16xf32>
        %31 = vector.broadcast %30 : vector<1x16xf32> to vector<8x16xf32>
        %32 = arith.mulf %29, %31 : vector<8x16xf32>
        %33 = arith.addf %28, %32 : vector<8x16xf32>
        %c0_21 = arith.constant 0 : index
        %c0_22 = arith.constant 0 : index
        %34 = vector.load %arg8[%c0_21, %c0_22] : memref<8x16xf32, #tpu.memory_space<vmem>>, vector<8x16xf32>
        tpu.vector_store %arg8[%c0_21, %c0_22], %33 {strides = array<i32>} : memref<8x16xf32, #tpu.memory_space<vmem>>, vector<8x16xf32>,
      } else {
      }
    } else {
    }
    return
  }
  func.func @transform_0(%arg0: i32, %arg1: i32) -> (i32, i32) {
    %c0_i32 = arith.constant 0 : i32
    %c0_i32_0 = arith.constant 0 : i32
    return %arg1, %c0_i32 : i32, i32
  }
  func.func @transform_1(%arg0: i32, %arg1: i32) -> (i32, i32) {
    %c0_i32 = arith.constant 0 : i32
    %c0_i32_0 = arith.constant 0 : i32
    return %arg1, %c0_i32 : i32, i32
  }
  func.func @transform_2(%arg0: i32, %arg1: i32) -> (i32, i32) {
    %c0_i32 = arith.constant 0 : i32
    %c0_i32_0 = arith.constant 0 : i32
    %c0_i32_1 = arith.constant 0 : i32
    return %c0_i32, %c0_i32_0 : i32, i32
  }
  func.func @transform_3(%arg0: i32, %arg1: i32) -> (i32, i32) {
    %c0_i32 = arith.constant 0 : i32
    %c0_i32_0 = arith.constant 0 : i32
    %c0_i32_1 = arith.constant 0 : i32
    return %c0_i32, %c0_i32_0 : i32, i32
  }
  func.func @transform_4(%arg0: i32, %arg1: i32) -> (i32, i32) {
    %c0_i32 = arith.constant 0 : i32
    %c0_i32_0 = arith.constant 0 : i32
    %c0_i32_1 = arith.constant 0 : i32
    return %c0_i32, %c0_i32_0 : i32, i32
  }
  func.func @transform_5(%arg0: i32, %arg1: i32) -> (i32, i32) {
    %c0_i32 = arith.constant 0 : i32
    %c0_i32_0 = arith.constant 0 : i32
    %c0_i32_1 = arith.constant 0 : i32
    return %c0_i32, %c0_i32_0 : i32, i32
  }
  func.func @transform_6(%arg0: i32, %arg1: i32) -> (i32, i32) {
    %c0_i32 = arith.constant 0 : i32
    %c0_i32_0 = arith.constant 0 : i32
    %c0_i32_1 = arith.constant 0 : i32
    return %c0_i32, %c0_i32_0 : i32, i32
  }
}

</mosaic_0001>

<llo_original>
// kernel: tpu_custom_call.1
$region0: #{tpu_custom_call.1}
  #allocation0 [shape = 'u32[]', space=smem, size = 0x4, offset = 0x4, fixed_abs, tag = 'smem constant byte address 0x4 - core index']
  #allocation1 [shape = 'u32[144,128]{1,0:T(1,128)}', space=vmem, size = 0x12000, scoped, tag = 'internal scratch']
  #allocation2 [shape = 'f32[2,8]{1,0:T(2,128)}', space=vmem, size = 0x400, scoped, tag = 'scratch operand']
  #allocation3 [shape = 'f32[8,16]{1,0:T(8,128)}', space=vmem, size = 0x1000, scoped, tag = 'scratch operand']
  %s0 = inlined_call_operand.vmem [shape: f32[24,8], index: 0, kind: input, shape index: {}]
  %s1 = inlined_call_operand.vmem [shape: f32[24,2], index: 1, kind: input, shape index: {}]
  %s2 = inlined_call_operand.vmem [shape: f32[2,1], index: 2, kind: input, shape index: {}]
  %s3 = inlined_call_operand.vmem [shape: f32[1,16], index: 3, kind: input, shape index: {}]
  %s4 = inlined_call_operand.vmem [shape: f32[8,16], index: 4, kind: input, shape index: {}]
  %s5 = inlined_call_operand.hbm [shape: f32[2,8], index: 5, kind: output, shape index: {0}]
  %s6 = inlined_call_operand.hbm [shape: f32[8,16], index: 6, kind: output, shape index: {1}]
  %7 = xla_tuple %s5, %s6
  %s8 = sld [smem:[#allocation0]]
  $region85: #{tpu_custom_call.1} parent=0
    _
  %s10 = ssub.s32 1, %s8
  %s11 = scalar_select 0, %s10, %s8
  $region1: #{tpu_custom_call.1} parent=0
    #allocation4 [shape = 'u8[1024]{0}', space=vmem, size = 0x400, scoped, tag = 'output window, operand 0, single buffered']
    #allocation5 [shape = 's32[2]{0}', space=sflag, size = 0x8, scoped, tag = 'scoped memory for tpu_custom_call.1']
    #allocation6 [shape = 'u8[4096]{0}', space=vmem, size = 0x1000, scoped, tag = 'output window, operand 1, single buffered']
    #allocation7 [shape = 's32[1]{0}', space=sflag, size = 0x4, scoped, tag = 'scoped memory for tpu_custom_call.1']
    %12 = vsyncpa [#allocation5], 0
    %13 = vsyncpa [#allocation7], 0
    loop: start=0, step=1, limit=8
    $region2: #{tpu_custom_call.1} parent=1 // loop_pre_header
      _
    $region3: #{tpu_custom_call.1} parent=1 // loop_header
      %s15 = sphi 0, %s19
      %p16 = scmp.ge.s32.totalorder %s15, 8
      %s22 = sphi 0, %s34
      %s23 = sphi 0, %s30
      %s24 = sphi 0, %s22
      %s25 = sphi 0, %s23
      %s26 = sphi 0, %s24
      %s27 = sphi 0, %s25
      %s37 = sphi 0, %s39
      %s40 = sphi 0, %s37
      %s41 = sphi 0, %s40
      %s57 = sphi 0, %s41
      %s63 = sphi 0, %s65
      %s66 = sphi 0, %s63
      %s67 = sphi 0, %s66
      %s83 = sphi 0, %s67
      %s87 = sphi 0, %s87
      %s89 = sphi 0, %s87
      %s90 = sphi 0, %s89
      %s104 = sphi 0, %s90
      %s108 = sphi 0, %s108
      %s110 = sphi 0, %s108
      %s111 = sphi 0, %s110
      %s125 = sphi 0, %s111
      %s129 = sphi 0, %s129
      %s131 = sphi 0, %s129
      %s132 = sphi 0, %s131
      %s146 = sphi 0, %s132
      %s150 = sphi 0, %s150
      %s152 = sphi 0, %s150
      %s153 = sphi 0, %s152
      %s167 = sphi 0, %s153
      %s171 = sphi 0, %s171
      %s173 = sphi 0, %s171
      %s174 = sphi 0, %s173
      %s188 = sphi 0, %s174
    $region4: #{tpu_custom_call.1} parent=1 // loop_header_branch
      %18 = sbr.rel (%p16) target = $region8
    $region5: #{tpu_custom_call.1} parent=1 // loop_body
      %s20 = ssub.s32 %s15, 1
      %s21 = ssub.s32 %s15, 2
      %s28 = sadd.s32 1, %s23
      %p29 = scmp.ge.s32.totalorder %s28, 3
      %s30 = scalar_select %p29, 0, %s28
      %s31 = sadd.s32 1, %s22
      %s32 = scalar_select %p29, %s31, %s22
      %p33 = scmp.ge.s32.totalorder %s32, 2
      %s34 = scalar_select %p33, 0, %s32
      %s35 = ssub.s32 %s23, %s30
      %p36 = scmp.eq.s32.totalorder %s35, 0
      %s38 = sadd.s32 %s37, 1
      %s39 = scalar_select %p36, %s37, %s38
      %p42 = pneg %p36
      %p43 = scmp.eq.s32.totalorder %s15, 5
      %p44 = por %p42, %p43
      %p45 = scmp.ne.s32.totalorder %s37, %s40
      %p46 = scmp.eq.s32.totalorder %s15, 0
      %p47 = por %p45, %p46
      %p48 = scmp.ne.s32.totalorder %s37, %s40
      %p49 = scmp.eq.s32.totalorder %s20, 5
      %p50 = por %p48, %p49
      %p51 = scmp.ne.s32.totalorder %s40, %s41
      %p52 = scmp.eq.s32.totalorder %s20, 0
      %p53 = por %p51, %p52
      %p54 = scmp.ne.s32.totalorder %s40, %s41
      %p55 = scmp.eq.s32.totalorder %s21, 5
      %p56 = por %p54, %p55
      %p58 = scmp.ne.s32.totalorder %s41, %s57
      %p59 = scmp.eq.s32.totalorder %s21, 0
      %p60 = por %p58, %p59
      %s61 = ssub.s32 %s23, %s30
      %p62 = scmp.eq.s32.totalorder %s61, 0
      %s64 = sadd.s32 %s63, 1
      %s65 = scalar_select %p62, %s63, %s64
      %p68 = pneg %p62
      %p69 = scmp.eq.s32.totalorder %s15, 5
      %p70 = por %p68, %p69
      %p71 = scmp.ne.s32.totalorder %s63, %s66
      %p72 = scmp.eq.s32.totalorder %s15, 0
      %p73 = por %p71, %p72
      %p74 = scmp.ne.s32.totalorder %s63, %s66
      %p75 = scmp.eq.s32.totalorder %s20, 5
      %p76 = por %p74, %p75
      %p77 = scmp.ne.s32.totalorder %s66, %s67
      %p78 = scmp.eq.s32.totalorder %s20, 0
      %p79 = por %p77, %p78
      %p80 = scmp.ne.s32.totalorder %s66, %s67
      %p81 = scmp.eq.s32.totalorder %s21, 5
      %p82 = por %p80, %p81
      %p84 = scmp.ne.s32.totalorder %s67, %s83
      %p85 = scmp.eq.s32.totalorder %s21, 0
      %p86 = por %p84, %p85
      %s88 = sadd.s32 %s87, 1
      %p91 = scmp.eq.s32.totalorder %s15, 5
      %p92 = scmp.ne.s32.totalorder %s87, %s89
      %p93 = scmp.eq.s32.totalorder %s15, 0
      %p94 = por %p92, %p93
      %p95 = scmp.ne.s32.totalorder %s87, %s89
      %p96 = scmp.eq.s32.totalorder %s20, 5
      %p97 = por %p95, %p96
      %p98 = scmp.ne.s32.totalorder %s89, %s90
      %p99 = scmp.eq.s32.totalorder %s20, 0
      %p100 = por %p98, %p99
      %p101 = scmp.ne.s32.totalorder %s89, %s90
      %p102 = scmp.eq.s32.totalorder %s21, 5
      %p103 = por %p101, %p102
      %p105 = scmp.ne.s32.totalorder %s90, %s104
      %p106 = scmp.eq.s32.totalorder %s21, 0
      %p107 = por %p105, %p106
      %s109 = sadd.s32 %s108, 1
      %p112 = scmp.eq.s32.totalorder %s15, 5
      %p113 = scmp.ne.s32.totalorder %s108, %s110
      %p114 = scmp.eq.s32.totalorder %s15, 0
      %p115 = por %p113, %p114
      %p116 = scmp.ne.s32.totalorder %s108, %s110
      %p117 = scmp.eq.s32.totalorder %s20, 5
      %p118 = por %p116, %p117
      %p119 = scmp.ne.s32.totalorder %s110, %s111
      %p120 = scmp.eq.s32.totalorder %s20, 0
      %p121 = por %p119, %p120
      %p122 = scmp.ne.s32.totalorder %s110, %s111
      %p123 = scmp.eq.s32.totalorder %s21, 5
      %p124 = por %p122, %p123
      %p126 = scmp.ne.s32.totalorder %s111, %s125
      %p127 = scmp.eq.s32.totalorder %s21, 0
      %p128 = por %p126, %p127
      %s130 = sadd.s32 %s129, 1
      %p133 = scmp.eq.s32.totalorder %s15, 5
      %p134 = scmp.ne.s32.totalorder %s129, %s131
      %p135 = scmp.eq.s32.totalorder %s15, 0
      %p136 = por %p134, %p135
      %p137 = scmp.ne.s32.totalorder %s129, %s131
      %p138 = scmp.eq.s32.totalorder %s20, 5
      %p139 = por %p137, %p138
      %p140 = scmp.ne.s32.totalorder %s131, %s132
      %p141 = scmp.eq.s32.totalorder %s20, 0
      %p142 = por %p140, %p141
      %p143 = scmp.ne.s32.totalorder %s131, %s132
      %p144 = scmp.eq.s32.totalorder %s21, 5
      %p145 = por %p143, %p144
      %p147 = scmp.ne.s32.totalorder %s132, %s146
      %p148 = scmp.eq.s32.totalorder %s21, 0
      %p149 = por %p147, %p148
      %s151 = sadd.s32 %s150, 1
      %p154 = scmp.eq.s32.totalorder %s15, 5
      %p155 = scmp.ne.s32.totalorder %s150, %s152
      %p156 = scmp.eq.s32.totalorder %s15, 0
      %p157 = por %p155, %p156
      %p158 = scmp.ne.s32.totalorder %s150, %s152
      %p159 = scmp.eq.s32.totalorder %s20, 5
      %p160 = por %p158, %p159
      %p161 = scmp.ne.s32.totalorder %s152, %s153
      %p162 = scmp.eq.s32.totalorder %s20, 0
      %p163 = por %p161, %p162
      %p164 = scmp.ne.s32.totalorder %s152, %s153
      %p165 = scmp.eq.s32.totalorder %s21, 5
      %p166 = por %p164, %p165
      %p168 = scmp.ne.s32.totalorder %s153, %s167
      %p169 = scmp.eq.s32.totalorder %s21, 0
      %p170 = por %p168, %p169
      %s172 = sadd.s32 %s171, 1
      %p175 = scmp.eq.s32.totalorder %s15, 5
      %p176 = scmp.ne.s32.totalorder %s171, %s173
      %p177 = scmp.eq.s32.totalorder %s15, 0
      %p178 = por %p176, %p177
      %p179 = scmp.ne.s32.totalorder %s171, %s173
      %p180 = scmp.eq.s32.totalorder %s20, 5
      %p181 = por %p179, %p180
      %p182 = scmp.ne.s32.totalorder %s173, %s174
      %p183 = scmp.eq.s32.totalorder %s20, 0
      %p184 = por %p182, %p183
      %p185 = scmp.ne.s32.totalorder %s173, %s174
      %p186 = scmp.eq.s32.totalorder %s21, 5
      %p187 = por %p185, %p186
      %p189 = scmp.ne.s32.totalorder %s174, %s188
      %p190 = scmp.eq.s32.totalorder %s21, 0
      %p191 = por %p189, %p190
      %p192 = scmp.le.s32.totalorder 1, %s15
      %p193 = scmp.lt.s32.totalorder %s15, 7
      %p194 = pnand %p192, %p193
      %p195 = pneg %p194
      // Predicated region
      $region9: #{tpu_custom_call.1} parent=5 // pred_check
        _
      $region10: #{tpu_custom_call.1} parent=5 // pred_check_branch
        %197 = sbr.rel (%p194) target = $region12
      $region11: #{tpu_custom_call.1} parent=5 // pred_region
        %s198 = ssub.s32 %s15, 1
        // Predicated region
        $region13: #{tpu_custom_call.1} parent=11 // pred_check
          %p199 = pneg %p100
        $region14: #{tpu_custom_call.1} parent=11 // pred_check_branch
          %201 = sbr.rel (%p199) target = $region16
        $region15: #{tpu_custom_call.1} parent=11 // pred_region
          _
        $region16: #{tpu_custom_call.1} parent=11 // pred_fallthru
          _
        // Predicated region
        $region17: #{tpu_custom_call.1} parent=11 // pred_check
          %p202 = pneg %p121
        $region18: #{tpu_custom_call.1} parent=11 // pred_check_branch
          %204 = sbr.rel (%p202) target = $region20
        $region19: #{tpu_custom_call.1} parent=11 // pred_region
          _
        $region20: #{tpu_custom_call.1} parent=11 // pred_fallthru
          _
        // Predicated region
        $region21: #{tpu_custom_call.1} parent=11 // pred_check
          %p205 = pneg %p142
        $region22: #{tpu_custom_call.1} parent=11 // pred_check_branch
          %207 = sbr.rel (%p205) target = $region24
        $region23: #{tpu_custom_call.1} parent=11 // pred_region
          _
        $region24: #{tpu_custom_call.1} parent=11 // pred_fallthru
          _
      $region12: #{tpu_custom_call.1} parent=5 // pred_fallthru
        _
      %p208 = scmp.lt.s32.totalorder %s15, 6
      // Predicated region
      $region25: #{tpu_custom_call.1} parent=5 // pred_check
        %p209 = pneg %p208
      $region26: #{tpu_custom_call.1} parent=5 // pred_check_branch
        %211 = sbr.rel (%p209) target = $region28
      $region27: #{tpu_custom_call.1} parent=5 // pred_region
        // Predicated region
        $region29: #{tpu_custom_call.1} parent=27 // pred_check
          %p212 = pneg %p47
        $region30: #{tpu_custom_call.1} parent=27 // pred_check_branch
          %214 = sbr.rel (%p212) target = $region32
        $region31: #{tpu_custom_call.1} parent=27 // pred_region
          %p215 = scmp.lt.s32.totalorder %s23, 2
          %s216 = scalar_select %p215, %s23, 2
          %s217 = smul.addr %s216, 8
          %s218 = scalar_lea.vmem %s0, %s217
        $region32: #{tpu_custom_call.1} parent=27 // pred_fallthru
          _
        // Predicated region
        $region33: #{tpu_custom_call.1} parent=27 // pred_check
          %p219 = pneg %p73
        $region34: #{tpu_custom_call.1} parent=27 // pred_check_branch
          %221 = sbr.rel (%p219) target = $region36
        $region35: #{tpu_custom_call.1} parent=27 // pred_region
          %p222 = scmp.lt.s32.totalorder %s23, 2
          %s223 = scalar_select %p222, %s23, 2
          %s224 = smul.addr %s223, 8
          %s225 = scalar_lea.vmem %s1, %s224
        $region36: #{tpu_custom_call.1} parent=27 // pred_fallthru
          _
      $region28: #{tpu_custom_call.1} parent=5 // pred_fallthru
        _
      %p226 = scmp.le.s32.totalorder 1, %s15
      %p227 = scmp.lt.s32.totalorder %s15, 7
      %p228 = pnand %p226, %p227
      %p229 = pneg %p228
      // Predicated region
      $region37: #{tpu_custom_call.1} parent=5 // pred_check
        _
      $region38: #{tpu_custom_call.1} parent=5 // pred_check_branch
        %231 = sbr.rel (%p228) target = $region40
      $region39: #{tpu_custom_call.1} parent=5 // pred_region
        %s232 = ssub.s32 %s15, 1
        %p233 = scmp.lt.s32.totalorder %s25, 2
        %s234 = scalar_select %p233, %s25, 2
        %s235 = smul.addr %s234, 8
        %s236 = scalar_lea.vmem %s0, %s235
        %p237 = pneg %p53
        %p238 = pneg %p50
        %p239 = scmp.lt.s32.totalorder %s25, 2
        %s240 = scalar_select %p239, %s25, 2
        %s241 = smul.addr %s240, 8
        %s242 = scalar_lea.vmem %s1, %s241
        %p243 = pneg %p79
        %p244 = pneg %p76
        %p245 = pneg %p100
        %p246 = pneg %p97
        %p247 = pneg %p121
        %p248 = pneg %p118
        %p249 = pneg %p142
        %p250 = pneg %p139
        %p251 = pneg %p163
        %p252 = pneg %p160
        %p253 = pneg %p184
        %p254 = pneg %p181
        %p255 = scmp.lt.s32.totalorder %s25, 2
        %s256 = scalar_select %p255, %s25, 2
        %s257 = smul.addr %s256, 8
        %s258 = scalar_lea.vmem %s0, %s257
        %p259 = scmp.lt.s32.totalorder %s25, 2
        %s260 = scalar_select %p259, %s25, 2
        %s261 = smul.addr %s260, 8
        %s262 = scalar_lea.vmem %s1, %s261
        %v263 = vld [vmem:[%s258] sm:$0xff]
        %v264 = vld [vmem:[%s262] sm:$0xff]
        %p265 = scmp.eq.s32.totalorder %s24, 0
        // Predicated region
        $region41: #{tpu_custom_call.1} parent=39 // pred_check
          %p266 = pneg %p265
        $region42: #{tpu_custom_call.1} parent=39 // pred_check_branch
          %268 = sbr.rel (%p266) target = $region44
        $region43: #{tpu_custom_call.1} parent=39 // pred_region
          %p269 = scmp.eq.s32.totalorder %s25, 0
          // Predicated region
          $region45: #{tpu_custom_call.1} parent=43 // pred_check
            %p270 = pneg %p269
          $region46: #{tpu_custom_call.1} parent=43 // pred_check_branch
            %272 = sbr.rel (%p270) target = $region48
          $region47: #{tpu_custom_call.1} parent=43 // pred_region
            %vm273 = vcmask 58368
            %274 = vst.msk [vmem:[#allocation2] sm:$0x3] %vm273, 0.0
          $region48: #{tpu_custom_call.1} parent=43 // pred_fallthru
            _
          %v275 = vld [vmem:[#allocation2] sm:$0x3]
          %276 = vxpose.xlu0.b32.start [1/16] %v264, 128
          %277 = vxpose.xlu0.b32.cont [2/16] 0.0, 128
          %278 = vxpose.xlu0.b32.cont [3/16] 0.0, 128
          %279 = vxpose.xlu0.b32.cont [4/16] 0.0, 128
          %280 = vxpose.xlu0.b32.cont [5/16] 0.0, 128
          %281 = vxpose.xlu0.b32.cont [6/16] 0.0, 128
          %282 = vxpose.xlu0.b32.cont [7/16] 0.0, 128
          %283 = vxpose.xlu0.b32.cont [8/16] 0.0, 128
          %284 = vxpose.xlu0.b32.cont [9/16] 0.0, 128
          %285 = vxpose.xlu0.b32.cont [10/16] 0.0, 128
          %286 = vxpose.xlu0.b32.cont [11/16] 0.0, 128
          %287 = vxpose.xlu0.b32.cont [12/16] 0.0, 128
          %288 = vxpose.xlu0.b32.cont [13/16] 0.0, 128
          %289 = vxpose.xlu0.b32.cont [14/16] 0.0, 128
          %290 = vxpose.xlu0.b32.cont [15/16] 0.0, 128
          %291 = vxpose.xlu0.b32.end [16/16] 0.0, 128
          %v292 = vpop.trf.xlu0
          %v293 = vpop.trf.xlu0
          %v294 = vpop.trf.xlu0
          %v295 = vpop.trf.xlu0
          %v296 = vpop.trf.xlu0
          %v297 = vpop.trf.xlu0
          %v298 = vpop.trf.xlu0
          %v299 = vpop.trf.xlu0
          %v300 = vpop.trf.xlu0
          %v301 = vpop.trf.xlu0
          %v302 = vpop.trf.xlu0
          %v303 = vpop.trf.xlu0
          %v304 = vpop.trf.xlu0
          %v305 = vpop.trf.xlu0
          %v306 = vpop.trf.xlu0
          %v307 = vpop.trf.xlu0
          %vm308 = vcmask 64512
          %v310 = vsel %vm308, %v292, 0
          %312 = vmatprep.subr.mxu0 0.0
          %313 = vmatpush1.msra.mxu0 0.0
          %314 = vmatprep.subr.mxu0 0.0
          %315 = vmatpush1.msra.mxu0 0.0
          %316 = vmatprep.subr.mxu0 0.0
          %317 = vmatpush1.msra.mxu0 0.0
          %318 = vmatprep.subr.mxu0 0.0
          %319 = vmatpush1.msra.mxu0 0.0
          %320 = vmatprep.subr.mxu0 0.0
          %321 = vmatpush1.msra.mxu0 0.0
          %322 = vmatprep.subr.mxu0 0.0
          %323 = vmatpush1.msra.mxu0 0.0
          %324 = vmatprep.subr.mxu0 0.0
          %325 = vmatpush1.msra.mxu0 0.0
          %326 = vmatprep.subr.mxu0 0.0
          %327 = vmatpush1.msra.mxu0 0.0
          %328 = vmatprep.subr.mxu0 0.0
          %329 = vmatpush1.msra.mxu0 0.0
          %330 = vmatprep.subr.mxu0 0.0
          %331 = vmatpush1.msra.mxu0 0.0
          %332 = vmatprep.subr.mxu0 0.0
          %333 = vmatpush1.msra.mxu0 0.0
          %334 = vmatprep.subr.mxu0 0.0
          %335 = vmatpush1.msra.mxu0 0.0
          %336 = vmatprep.subr.mxu0 0.0
          %337 = vmatpush1.msra.mxu0 0.0
          %338 = vmatprep.subr.mxu0 0.0
          %339 = vmatpush1.msra.mxu0 0.0
          %340 = vmatprep.subr.mxu0 0.0
          %341 = vmatpush1.msra.mxu0 0.0
          %342 = vmatprep.subr.mxu0 0.0
          %343 = vmatpush1.msra.mxu0 %v263
          %344 = vmatprep.subr.mxu0 0.0
          %345 = vmatpush2.msra.mxu0 0.0
          %346 = vmatprep.subr.mxu0 0.0
          %347 = vmatpush2.msra.mxu0 0.0
          %348 = vmatprep.subr.mxu0 0.0
          %349 = vmatpush2.msra.mxu0 0.0
          %350 = vmatprep.subr.mxu0 0.0
          %351 = vmatpush2.msra.mxu0 0.0
          %352 = vmatprep.subr.mxu0 0.0
          %353 = vmatpush2.msra.mxu0 0.0
          %354 = vmatprep.subr.mxu0 0.0
          %355 = vmatpush2.msra.mxu0 0.0
          %356 = vmatprep.subr.mxu0 0.0
          %357 = vmatpush2.msra.mxu0 0.0
          %358 = vmatprep.subr.mxu0 0.0
          %359 = vmatpush2.msra.mxu0 0.0
          %360 = vmatprep.subr.mxu0 0.0
          %361 = vmatpush2.msra.mxu0 0.0
          %362 = vmatprep.subr.mxu0 0.0
          %363 = vmatpush2.msra.mxu0 0.0
          %364 = vmatprep.subr.mxu0 0.0
          %365 = vmatpush2.msra.mxu0 0.0
          %366 = vmatprep.subr.mxu0 0.0
          %367 = vmatpush2.msra.mxu0 0.0
          %368 = vmatprep.subr.mxu0 0.0
          %369 = vmatpush2.msra.mxu0 0.0
          %370 = vmatprep.subr.mxu0 0.0
          %371 = vmatpush2.msra.mxu0 0.0
          %372 = vmatprep.subr.mxu0 0.0
          %373 = vmatpush2.msra.mxu0 0.0
          %374 = vmatprep.subr.mxu0 0.0
          %375 = vmatpush2.msra.mxu0 0.0
          %376 = vmatprep.mubr.f32.mxu0 0.0
          %377 = vmatmul.mubr.f32.gmra.mxu0 %v310
          %v378 = vpop.f32.mrf.mxu0
          %v379 = vadd.f32 0.0, %v378
          %v380 = vpop.f32.mrf.mxu0
          %381 = vdwg.mxu0
          %v382 = vadd.f32 %v275, %v379
          %vm383 = vcmask 58368
          %384 = vst.msk [vmem:[#allocation2] sm:$0x3] %vm383, %v382
          %p385 = scmp.eq.s32.totalorder %s25, 2
          // Predicated region
          $region49: #{tpu_custom_call.1} parent=43 // pred_check
            %p386 = pneg %p385
          $region50: #{tpu_custom_call.1} parent=43 // pred_check_branch
            %388 = sbr.rel (%p386) target = $region52
          $region51: #{tpu_custom_call.1} parent=43 // pred_region
            %v389 = vld [vmem:[#allocation2] sm:$0x3]
            %v390 = vld [vmem:[%s2] sm:$0x3]
            %392 = vset.pattern.permute.xlu0 0
            %393 = vperm.xlu0 %392, %v390
            %v394 = vpop.permute.xlu0 %393
            %v396 = vmul.f32 %v389, %v394
            %397 = vst.msk [vmem:[#allocation2] sm:$0x3] %vm383, %v396
            %398 = vst.msk [vmem:[#allocation4] sm:$0x3] %vm383, %v396
          $region52: #{tpu_custom_call.1} parent=43 // pred_fallthru
            _
        $region44: #{tpu_custom_call.1} parent=39 // pred_fallthru
          _
        %p399 = scmp.eq.s32.totalorder %s24, 1
        // Predicated region
        $region53: #{tpu_custom_call.1} parent=39 // pred_check
          %p400 = pneg %p399
        $region54: #{tpu_custom_call.1} parent=39 // pred_check_branch
          %402 = sbr.rel (%p400) target = $region56
        $region55: #{tpu_custom_call.1} parent=39 // pred_region
          %p403 = scmp.eq.s32.totalorder %s25, 0
          // Predicated region
          $region57: #{tpu_custom_call.1} parent=55 // pred_check
            %p404 = pneg %p403
          $region58: #{tpu_custom_call.1} parent=55 // pred_check_branch
            %406 = sbr.rel (%p404) target = $region60
          $region59: #{tpu_custom_call.1} parent=55 // pred_region
            %vm407 = vcmask 130048
            %408 = vst.msk [vmem:[#allocation3] sm:$0xff] %vm407, 0.0
          $region60: #{tpu_custom_call.1} parent=55 // pred_fallthru
            _
          %v409 = vld [vmem:[#allocation2] sm:$0x3]
          %vm410 = vcmask 15360
          %v412 = vsel %vm410, %v264, 0
          %vm414 = vcmask 1041408
          %v416 = vsel %vm414, %v409, 0
          %418 = vmatprep.subr.mxu0 0.0
          %419 = vmatpush1.msra.mxu0 0.0
          %420 = vmatprep.subr.mxu0 0.0
          %421 = vmatpush1.msra.mxu0 0.0
          %422 = vmatprep.subr.mxu0 0.0
          %423 = vmatpush1.msra.mxu0 0.0
          %424 = vmatprep.subr.mxu0 0.0
          %425 = vmatpush1.msra.mxu0 0.0
          %426 = vmatprep.subr.mxu0 0.0
          %427 = vmatpush1.msra.mxu0 0.0
          %428 = vmatprep.subr.mxu0 0.0
          %429 = vmatpush1.msra.mxu0 0.0
          %430 = vmatprep.subr.mxu0 0.0
          %431 = vmatpush1.msra.mxu0 0.0
          %432 = vmatprep.subr.mxu0 0.0
          %433 = vmatpush1.msra.mxu0 0.0
          %434 = vmatprep.subr.mxu0 0.0
          %435 = vmatpush1.msra.mxu0 0.0
          %436 = vmatprep.subr.mxu0 0.0
          %437 = vmatpush1.msra.mxu0 0.0
          %438 = vmatprep.subr.mxu0 0.0
          %439 = vmatpush1.msra.mxu0 0.0
          %440 = vmatprep.subr.mxu0 0.0
          %441 = vmatpush1.msra.mxu0 0.0
          %442 = vmatprep.subr.mxu0 0.0
          %443 = vmatpush1.msra.mxu0 0.0
          %444 = vmatprep.subr.mxu0 0.0
          %445 = vmatpush1.msra.mxu0 0.0
          %446 = vmatprep.subr.mxu0 0.0
          %447 = vmatpush1.msra.mxu0 0.0
          %448 = vmatprep.subr.mxu0 0.0
          %449 = vmatpush1.msra.mxu0 %v416
          %450 = vmatprep.subr.mxu0 0.0
          %451 = vmatpush2.msra.mxu0 0.0
          %452 = vmatprep.subr.mxu0 0.0
          %453 = vmatpush2.msra.mxu0 0.0
          %454 = vmatprep.subr.mxu0 0.0
          %455 = vmatpush2.msra.mxu0 0.0
          %456 = vmatprep.subr.mxu0 0.0
          %457 = vmatpush2.msra.mxu0 0.0
          %458 = vmatprep.subr.mxu0 0.0
          %459 = vmatpush2.msra.mxu0 0.0
          %460 = vmatprep.subr.mxu0 0.0
          %461 = vmatpush2.msra.mxu0 0.0
          %462 = vmatprep.subr.mxu0 0.0
          %463 = vmatpush2.msra.mxu0 0.0
          %464 = vmatprep.subr.mxu0 0.0
          %465 = vmatpush2.msra.mxu0 0.0
          %466 = vmatprep.subr.mxu0 0.0
          %467 = vmatpush2.msra.mxu0 0.0
          %468 = vmatprep.subr.mxu0 0.0
          %469 = vmatpush2.msra.mxu0 0.0
          %470 = vmatprep.subr.mxu0 0.0
          %471 = vmatpush2.msra.mxu0 0.0
          %472 = vmatprep.subr.mxu0 0.0
          %473 = vmatpush2.msra.mxu0 0.0
          %474 = vmatprep.subr.mxu0 0.0
          %475 = vmatpush2.msra.mxu0 0.0
          %476 = vmatprep.subr.mxu0 0.0
          %477 = vmatpush2.msra.mxu0 0.0
          %478 = vmatprep.subr.mxu0 0.0
          %479 = vmatpush2.msra.mxu0 0.0
          %480 = vmatprep.subr.mxu0 0.0
          %481 = vmatpush2.msra.mxu0 0.0
          %482 = vmatprep.mubr.f32.mxu0 0.0
          %483 = vmatmul.mubr.f32.gmra.mxu0 %v412
          %v484 = vpop.f32.mrf.mxu0
          %v485 = vadd.f32 0.0, %v484
          %v486 = vpop.f32.mrf.mxu0
          %487 = vdwg.mxu0
          %v488 = vsub.f32 %v263, %v485
          %489 = vset.pattern.permute.xlu0 0
          %490 = vperm.xlu0 %489, %v264
          %v491 = vpop.permute.xlu0 %490
          %v493 = vmul.f32 %v488, %v491
          %494 = vset.pattern.permute.xlu0 1
          %495 = vperm.xlu0 %494, %v264
          %v496 = vpop.permute.xlu0 %495
          %v498 = vmul.f32 %v488, %v496
          %500 = vrot.lane.b32.xlu0 %v498, 8
          %v501 = vpop.permute.xlu0 %500
          %vm503 = vcmask 64512
          %v504 = vsel %vm503, %v493, %v501
          %v505 = vld [vmem:[#allocation3] sm:$0xff]
          %506 = vxpose.xlu0.b32.start [1/16] %v488, 128
          %507 = vxpose.xlu0.b32.cont [2/16] 0.0, 128
          %508 = vxpose.xlu0.b32.cont [3/16] 0.0, 128
          %509 = vxpose.xlu0.b32.cont [4/16] 0.0, 128
          %510 = vxpose.xlu0.b32.cont [5/16] 0.0, 128
          %511 = vxpose.xlu0.b32.cont [6/16] 0.0, 128
          %512 = vxpose.xlu0.b32.cont [7/16] 0.0, 128
          %513 = vxpose.xlu0.b32.cont [8/16] 0.0, 128
          %514 = vxpose.xlu0.b32.cont [9/16] 0.0, 128
          %515 = vxpose.xlu0.b32.cont [10/16] 0.0, 128
          %516 = vxpose.xlu0.b32.cont [11/16] 0.0, 128
          %517 = vxpose.xlu0.b32.cont [12/16] 0.0, 128
          %518 = vxpose.xlu0.b32.cont [13/16] 0.0, 128
          %519 = vxpose.xlu0.b32.cont [14/16] 0.0, 128
          %520 = vxpose.xlu0.b32.cont [15/16] 0.0, 128
          %521 = vxpose.xlu0.b32.end [16/16] 0.0, 128
          %v522 = vpop.trf.xlu0
          %v523 = vpop.trf.xlu0
          %v524 = vpop.trf.xlu0
          %v525 = vpop.trf.xlu0
          %v526 = vpop.trf.xlu0
          %v527 = vpop.trf.xlu0
          %v528 = vpop.trf.xlu0
          %v529 = vpop.trf.xlu0
          %v530 = vpop.trf.xlu0
          %v531 = vpop.trf.xlu0
          %v532 = vpop.trf.xlu0
          %v533 = vpop.trf.xlu0
          %v534 = vpop.trf.xlu0
          %v535 = vpop.trf.xlu0
          %v536 = vpop.trf.xlu0
          %v537 = vpop.trf.xlu0
          %v539 = vsel %vm503, %v522, 0
          %541 = vmatprep.subr.mxu0 0.0
          %542 = vmatpush1.msra.mxu0 0.0
          %543 = vmatprep.subr.mxu0 0.0
          %544 = vmatpush1.msra.mxu0 0.0
          %545 = vmatprep.subr.mxu0 0.0
          %546 = vmatpush1.msra.mxu0 0.0
          %547 = vmatprep.subr.mxu0 0.0
          %548 = vmatpush1.msra.mxu0 0.0
          %549 = vmatprep.subr.mxu0 0.0
          %550 = vmatpush1.msra.mxu0 0.0
          %551 = vmatprep.subr.mxu0 0.0
          %552 = vmatpush1.msra.mxu0 0.0
          %553 = vmatprep.subr.mxu0 0.0
          %554 = vmatpush1.msra.mxu0 0.0
          %555 = vmatprep.subr.mxu0 0.0
          %556 = vmatpush1.msra.mxu0 0.0
          %557 = vmatprep.subr.mxu0 0.0
          %558 = vmatpush1.msra.mxu0 0.0
          %559 = vmatprep.subr.mxu0 0.0
          %560 = vmatpush1.msra.mxu0 0.0
          %561 = vmatprep.subr.mxu0 0.0
          %562 = vmatpush1.msra.mxu0 0.0
          %563 = vmatprep.subr.mxu0 0.0
          %564 = vmatpush1.msra.mxu0 0.0
          %565 = vmatprep.subr.mxu0 0.0
          %566 = vmatpush1.msra.mxu0 0.0
          %567 = vmatprep.subr.mxu0 0.0
          %568 = vmatpush1.msra.mxu0 0.0
          %569 = vmatprep.subr.mxu0 0.0
          %570 = vmatpush1.msra.mxu0 0.0
          %571 = vmatprep.subr.mxu0 0.0
          %572 = vmatpush1.msra.mxu0 %v504
          %573 = vmatprep.subr.mxu0 0.0
          %574 = vmatpush2.msra.mxu0 0.0
          %575 = vmatprep.subr.mxu0 0.0
          %576 = vmatpush2.msra.mxu0 0.0
          %577 = vmatprep.subr.mxu0 0.0
          %578 = vmatpush2.msra.mxu0 0.0
          %579 = vmatprep.subr.mxu0 0.0
          %580 = vmatpush2.msra.mxu0 0.0
          %581 = vmatprep.subr.mxu0 0.0
          %582 = vmatpush2.msra.mxu0 0.0
          %583 = vmatprep.subr.mxu0 0.0
          %584 = vmatpush2.msra.mxu0 0.0
          %585 = vmatprep.subr.mxu0 0.0
          %586 = vmatpush2.msra.mxu0 0.0
          %587 = vmatprep.subr.mxu0 0.0
          %588 = vmatpush2.msra.mxu0 0.0
          %589 = vmatprep.subr.mxu0 0.0
          %590 = vmatpush2.msra.mxu0 0.0
          %591 = vmatprep.subr.mxu0 0.0
          %592 = vmatpush2.msra.mxu0 0.0
          %593 = vmatprep.subr.mxu0 0.0
          %594 = vmatpush2.msra.mxu0 0.0
          %595 = vmatprep.subr.mxu0 0.0
          %596 = vmatpush2.msra.mxu0 0.0
          %597 = vmatprep.subr.mxu0 0.0
          %598 = vmatpush2.msra.mxu0 0.0
          %599 = vmatprep.subr.mxu0 0.0
          %600 = vmatpush2.msra.mxu0 0.0
          %601 = vmatprep.subr.mxu0 0.0
          %602 = vmatpush2.msra.mxu0 0.0
          %603 = vmatprep.subr.mxu0 0.0
          %604 = vmatpush2.msra.mxu0 0.0
          %605 = vmatprep.mubr.f32.mxu0 0.0
          %606 = vmatmul.mubr.f32.gmra.mxu0 %v539
          %v607 = vpop.f32.mrf.mxu0
          %v608 = vadd.f32 0.0, %v607
          %v609 = vpop.f32.mrf.mxu0
          %610 = vdwg.mxu0
          %v611 = vadd.f32 %v505, %v608
          %vm612 = vcmask 130048
          %613 = vst.msk [vmem:[#allocation3] sm:$0xff] %vm612, %v611
          %p614 = scmp.eq.s32.totalorder %s25, 2
          // Predicated region
          $region61: #{tpu_custom_call.1} parent=55 // pred_check
            %p615 = pneg %p614
          $region62: #{tpu_custom_call.1} parent=55 // pred_check_branch
            %617 = sbr.rel (%p615) target = $region64
          $region63: #{tpu_custom_call.1} parent=55 // pred_region
            %v618 = vld [vmem:[%s4] sm:$0xff]
            %v619 = vld [vmem:[#allocation3] sm:$0xff]
            %v620 = vld [vmem:[%s3] sm:$0x1]
            %v622 = vlaneseq
            %v623 = vshrl.u32 %v622, 7
            %v624 = vsub.s32 0, %v623
            %v625 = vrot.slane %v620, %v624
            %v627 = vmul.f32 %v619, %v625
            %v628 = vadd.f32 %v618, %v627
            %629 = vst.msk [vmem:[#allocation6] sm:$0xff] %vm612, %v628
          $region64: #{tpu_custom_call.1} parent=55 // pred_fallthru
            _
        $region56: #{tpu_custom_call.1} parent=39 // pred_fallthru
          _
        // Predicated region
        $region65: #{tpu_custom_call.1} parent=39 // pred_check
          %p630 = pneg %p160
        $region66: #{tpu_custom_call.1} parent=39 // pred_check_branch
          %632 = sbr.rel (%p630) target = $region68
        $region67: #{tpu_custom_call.1} parent=39 // pred_region
          %s634 = ssub.s32 32, 32
          %635 = vsyncadd [#allocation5], %s634
          %s637 = sshll.u32 [#allocation4], 4
          %s638 = int_to_ptr.vmem [resolvable:$true] %s637
          %640 = dma.vmem_to_hbm [thread:$0]  %s638, 32, %s5, [#allocation5]
        $region68: #{tpu_custom_call.1} parent=39 // pred_fallthru
          _
        // Predicated region
        $region69: #{tpu_custom_call.1} parent=39 // pred_check
          %p641 = pneg %p181
        $region70: #{tpu_custom_call.1} parent=39 // pred_check_branch
          %643 = sbr.rel (%p641) target = $region72
        $region71: #{tpu_custom_call.1} parent=39 // pred_region
          %s645 = ssub.s32 128, 128
          %646 = vsyncadd [#allocation7], %s645
          %s648 = sshll.u32 [#allocation6], 4
          %s649 = int_to_ptr.vmem [resolvable:$true] %s648
          %651 = dma.vmem_to_hbm [thread:$0]  %s649, 128, %s6, [#allocation7]
        $region72: #{tpu_custom_call.1} parent=39 // pred_fallthru
          _
        // Predicated region
        $region73: #{tpu_custom_call.1} parent=39 // pred_check
          %p652 = pneg %p160
        $region74: #{tpu_custom_call.1} parent=39 // pred_check_branch
          %654 = sbr.rel (%p652) target = $region76
        $region75: #{tpu_custom_call.1} parent=39 // pred_region
          %655 = dma.done [#allocation5], 32
        $region76: #{tpu_custom_call.1} parent=39 // pred_fallthru
          _
        // Predicated region
        $region77: #{tpu_custom_call.1} parent=39 // pred_check
          %p656 = pneg %p181
        $region78: #{tpu_custom_call.1} parent=39 // pred_check_branch
          %658 = sbr.rel (%p656) target = $region80
        $region79: #{tpu_custom_call.1} parent=39 // pred_region
          %659 = dma.done [#allocation7], 128
        $region80: #{tpu_custom_call.1} parent=39 // pred_fallthru
          _
      $region40: #{tpu_custom_call.1} parent=5 // pred_fallthru
        _
      %p660 = scmp.le.s32.totalorder 2, %s15
      // Predicated region
      $region81: #{tpu_custom_call.1} parent=5 // pred_check
        %p661 = pneg %p660
      $region82: #{tpu_custom_call.1} parent=5 // pred_check_branch
        %663 = sbr.rel (%p661) target = $region84
      $region83: #{tpu_custom_call.1} parent=5 // pred_region
        %s664 = ssub.s32 %s15, 2
      $region84: #{tpu_custom_call.1} parent=5 // pred_fallthru
        _
    $region6: #{tpu_custom_call.1} parent=1 // loop_footer
      %s19 = sadd.s32 1, %s15
    $region7: #{tpu_custom_call.1} parent=1 // loop_footer_branch
      %14 = sbr.rel target = $region3
    $region8: #{tpu_custom_call.1} parent=1 // loop_exit
      _
    %665 = vsyncpa [#allocation5], 1
    %s666 = scalar_lea.sflag [#allocation5], 1
    %667 = vsyncpa %s666, 1
    %668 = vsyncpa [#allocation7], 1

</llo_original>
